<compile_context>
chip_gen: v5e
topology: v5e:2x2
jax: 0.10.0
libtpu: 0.0.40
codegen_flags: <defaults>
</compile_context>

<pallas_src>
import math

import jax
import jax.numpy as jnp
from jax.experimental import pallas as pl
from jax.experimental.pallas import tpu as pltpu


# ---------------------------------------------------------------------------
# Kernels
# ---------------------------------------------------------------------------

def _mlp_kernel_fused(x_ref, w1_ref, b1_ref, w2_ref, b2_ref, o_ref):
    """Whole K reduction resident in VMEM: single-pass fused MLP."""
    h = jnp.dot(x_ref[...], w1_ref[...], preferred_element_type=jnp.float32)
    h = jnp.maximum(h + b1_ref[...], 0.0)
    y = jnp.dot(h.astype(jnp.bfloat16), w2_ref[...],
                preferred_element_type=jnp.float32)
    o_ref[...] = (y + b2_ref[...]).astype(o_ref.dtype)


def _mlp_kernel_ktiled(x_ref, w1_ref, b1_ref, w2_ref, b2_ref, o_ref, h_acc_ref):
    """Fallback for huge input_dim: K tiled as the last grid axis."""
    k = pl.program_id(1)

    @pl.when(k == 0)
    def _():
        h_acc_ref[...] = jnp.zeros_like(h_acc_ref)

    h_acc_ref[...] += jnp.dot(x_ref[...], w1_ref[...],
                              preferred_element_type=jnp.float32)

    @pl.when(k == pl.num_programs(1) - 1)
    def _():
        h = jnp.maximum(h_acc_ref[...] + b1_ref[...], 0.0)
        y = jnp.dot(h.astype(jnp.bfloat16), w2_ref[...],
                    preferred_element_type=jnp.float32)
        o_ref[...] = (y + b2_ref[...]).astype(o_ref.dtype)


# ---------------------------------------------------------------------------
# Planning helpers (all static Python ints)
# ---------------------------------------------------------------------------

def _round_up(x, m):
    return (x + m - 1) // m * m


def _vmem_capacity_bytes():
    try:
        return int(pltpu.get_tpu_info().vmem_capacity_bytes)
    except Exception:
        return 64 << 20  # conservative: v7x per-TensorCore VMEM


def _make_plan(input_dim, hidden, out_dim):
    vmem_cap = _vmem_capacity_bytes()
    # 128-MiB parts (v5e/v6e) can afford larger M tiles than v7x (64 MiB/TC).
    tm_cap = 512 if vmem_cap >= (100 << 20) else 256
    out_p = _round_up(out_dim, 128)
    budget = int(vmem_cap * 0.45)  # headroom for compiler-internal scratch

    def footprint(tm, tk):
        return (2 * tm * tk * 2            # x tile (bf16, double-buffered)
                + 2 * tk * hidden * 2      # w1 tile (bf16, double-buffered)
                + 2 * hidden * 4           # b1
                + 2 * hidden * out_p * 2   # w2 (bf16)
                + 2 * out_p * 4            # b2
                + 2 * tm * out_p * 4       # out tile (f32)
                + tm * hidden * 4)         # h accumulator / intermediate

    if footprint(tm_cap, input_dim) <= budget:
        # Single pass: whole K fits; no K padding of weights or activations.
        return dict(vmem_cap=vmem_cap, tm_cap=tm_cap, out_p=out_p,
                    k_tiled=False, tk=input_dim, k_pad=input_dim)

    tk = 2048
    while tk > 128 and footprint(tm_cap, tk) > budget:
        tk //= 2
    tk = max(tk, 128)
    return dict(vmem_cap=vmem_cap, tm_cap=tm_cap, out_p=out_p,
                k_tiled=True, tk=tk, k_pad=_round_up(input_dim, tk))


def _choose_tm(n, tm_cap):
    """Largest M tile wasting <=12.5% of rows on padding (min 16 for bf16)."""
    for tm in (tm_cap, 256, 128, 64, 32, 16):
        if tm > tm_cap:
            continue
        m_pad = _round_up(n, tm)
        if m_pad == n or (m_pad - n) / m_pad <= 0.125:
            return tm, m_pad
    return 16, _round_up(n, 16)


# ---------------------------------------------------------------------------
# Parameter preparation (call ONCE at init, not per forward)
# ---------------------------------------------------------------------------

def prepare_params(w1, b1, w2, b2):
    """Pad / cast parameters once.

    w1 keeps its natural hidden (lane) width in HBM so the dominant weight
    stream is not amplified; only the tiny output dim is padded to 128 lanes.
    Weights are cast to bf16 (native MXU rate); biases stay f32 and are added
    into the f32 accumulator.
    """
    input_dim, hidden = w1.shape
    out_dim = w2.shape[1]
    plan = _make_plan(input_dim, hidden, out_dim)
    out_p = plan["out_p"]

    w1_p = w1
    if plan["k_pad"] != input_dim:
        w1_p = jnp.pad(w1_p, ((0, plan["k_pad"] - input_dim), (0, 0)))
    w1_p = w1_p.astype(jnp.bfloat16)
    b1_p = b1.astype(jnp.float32).reshape(1, hidden)
    w2_p = jnp.pad(w2, ((0, 0), (0, out_p - out_dim))).astype(jnp.bfloat16)
    b2_p = jnp.pad(b2.astype(jnp.float32),
                   (0, out_p - out_dim)).reshape(1, out_p)

    return dict(w1=w1_p, b1=b1_p, w2=w2_p, b2=b2_p,
                input_dim=input_dim, hidden=hidden, out_dim=out_dim, plan=plan)


# ---------------------------------------------------------------------------
# Forward pass
# ---------------------------------------------------------------------------

def architecture_forward(x, params):
    """x.view(-1, input_dim) -> Linear -> ReLU -> Linear (one fused kernel)."""
    n = x.shape[0]
    input_dim = math.prod(x.shape[1:])
    assert input_dim == params["input_dim"], "input_dim mismatch"

    plan = params["plan"]
    hidden = params["hidden"]
    out_dim = params["out_dim"]
    out_p = plan["out_p"]
    k_pad, tk = plan["k_pad"], plan["tk"]

    tm, m_pad = _choose_tm(n, plan["tm_cap"])

    # Single fused wrapper op for the activation: pad (batch / K) + bf16 cast.
    x2d = x.reshape(n, input_dim)
    if m_pad != n or k_pad != input_dim:
        x2d = jnp.pad(x2d, ((0, m_pad - n), (0, k_pad - input_dim)))
    x_b = x2d.astype(jnp.bfloat16)

    # VMEM limit from the actual tile footprint + headroom, clamped to the
    # physical VMEM of this chip generation.
    fp = (2 * tm * tk * 2 + 2 * tk * hidden * 2 + 2 * hidden * 4
          + 2 * hidden * out_p * 2 + 2 * out_p * 4 + 2 * tm * out_p * 4
          + tm * hidden * 4)
    vmem_limit = min(fp + (4 << 20), int(plan["vmem_cap"] * 0.7))

    cost = pl.CostEstimate(
        flops=2 * m_pad * k_pad * hidden + 2 * m_pad * hidden * out_p,
        transcendentals=0,
        bytes_accessed=(2 * (m_pad * k_pad + k_pad * hidden + hidden * out_p)
                        + 4 * (hidden + out_p + m_pad * out_p)),
    )

    if not plan["k_tiled"]:
        grid = (m_pad // tm,)
        in_specs = [
            pl.BlockSpec((tm, k_pad), lambda i: (i, 0)),        # x
            pl.BlockSpec((k_pad, hidden), lambda i: (0, 0)),    # w1 (natural width)
            pl.BlockSpec((1, hidden), lambda i: (0, 0)),        # b1
            pl.BlockSpec((hidden, out_p), lambda i: (0, 0)),    # w2
            pl.BlockSpec((1, out_p), lambda i: (0, 0)),         # b2
        ]
        out_specs = pl.BlockSpec((tm, out_p), lambda i: (i, 0))
        scratch_shapes = []
        kernel = _mlp_kernel_fused
        dim_sem = ("parallel",)
    else:
        grid = (m_pad // tm, k_pad // tk)
        in_specs = [
            pl.BlockSpec((tm, tk), lambda i, k: (i, k)),        # x
            pl.BlockSpec((tk, hidden), lambda i, k: (k, 0)),    # w1
            pl.BlockSpec((1, hidden), lambda i, k: (0, 0)),     # b1
            pl.BlockSpec((hidden, out_p), lambda i, k: (0, 0)), # w2
            pl.BlockSpec((1, out_p), lambda i, k: (0, 0)),      # b2
        ]
        out_specs = pl.BlockSpec((tm, out_p), lambda i, k: (i, 0))
        scratch_shapes = [pltpu.VMEM((tm, hidden), jnp.float32)]
        kernel = _mlp_kernel_ktiled
        dim_sem = ("parallel", "arbitrary")

    out_padded = pl.pallas_call(
        kernel,
        out_shape=jax.ShapeDtypeStruct((m_pad, out_p), jnp.float32),
        grid_spec=pltpu.PrefetchScalarGridSpec(
            num_scalar_prefetch=0,
            grid=grid,
            in_specs=in_specs,
            out_specs=out_specs,
            scratch_shapes=scratch_shapes,
        ),
        compiler_params=pltpu.CompilerParams(
            dimension_semantics=dim_sem,
            vmem_limit_bytes=vmem_limit),
        cost_estimate=cost,
    )(x_b, params["w1"], params["b1"], params["w2"], params["b2"])

    return out_padded[:n, :out_dim]


def _reference(x_nchw, w1, b1, w2, b2):
    n = x_nchw.shape[0]
    x2d = x_nchw.reshape(n, -1)
    h = jnp.maximum(x2d @ w1 + b1, 0.0)
    return h @ w2 + b2


if __name__ == "__main__":
    key = jax.random.PRNGKey(0)
    k_x, k_w1, k_b1, k_w2, k_b2 = jax.random.split(key, 5)

    # Small NCHW input consistent with an image-classification architecture.
    batch, channels, spatial = 2, 4, 16
    input_dim = channels * spatial * spatial          # 1024
    hidden, out_dim = 32, 8

    x = jax.random.normal(k_x, (batch, channels, spatial, spatial), jnp.float32)

    # Deterministic parameter init (uniform, PyTorch-Linear-like scale).
    lim1 = 1.0 / (input_dim ** 0.5)
    lim2 = 1.0 / (hidden ** 0.5)
    w1 = jax.random.uniform(k_w1, (input_dim, hidden), jnp.float32, -lim1, lim1)
    b1 = jax.random.uniform(k_b1, (hidden,), jnp.float32, -lim1, lim1)
    w2 = jax.random.uniform(k_w2, (hidden, out_dim), jnp.float32, -lim2, lim2)
    b2 = jax.random.uniform(k_b2, (out_dim,), jnp.float32, -lim2, lim2)

    params = prepare_params(w1, b1, w2, b2)   # one-time weight prep (hoisted)
    y = architecture_forward(x, params)
    jax.block_until_ready(y)

    y_ref = _reference(x, w1, b1, w2, b2)
    assert y.shape == (batch, out_dim)
    # bf16 MXU operands with f32 accumulation -> loosened tolerance vs f32 ref.
    max_err = float(jnp.max(jnp.abs(y - y_ref)))
    assert jnp.allclose(y, y_ref, atol=3e-2, rtol=3e-2), (
        f"mismatch vs reference (max abs err {max_err})")

    print("KERNEL_OK")
</pallas_src>

<mosaic_0001>
module attributes {stable_mosaic.version = 11 : i64} {
  func.func @_mlp_kernel_fused(%arg0: i32, %arg1: memref<16x1024xbf16, #tpu.memory_space<vmem>>, %arg2: memref<1024x32xbf16, #tpu.memory_space<vmem>>, %arg3: memref<1x32xf32, #tpu.memory_space<vmem>>, %arg4: memref<32x128xbf16, #tpu.memory_space<vmem>>, %arg5: memref<1x128xf32, #tpu.memory_space<vmem>>, %arg6: memref<16x128xf32, #tpu.memory_space<vmem>>) attributes {dimension_semantics = [#tpu.dimension_semantics<parallel>], iteration_bounds = array<i64: 1>, scalar_prefetch = 0 : i64, scratch_operands = 0 : i64, tpu.core_type = #tpu.core_type<tc>, window_params = [{transform_indices = @transform_0, window_bounds = array<i64: 16, 1024>}, {pipeline_mode = #tpu.pipeline_mode<synchronous>, transform_indices = @transform_1, window_bounds = array<i64: 1024, 32>}, {pipeline_mode = #tpu.pipeline_mode<synchronous>, transform_indices = @transform_2, window_bounds = array<i64: 1, 32>}, {pipeline_mode = #tpu.pipeline_mode<synchronous>, transform_indices = @transform_3, window_bounds = array<i64: 32, 128>}, {pipeline_mode = #tpu.pipeline_mode<synchronous>, transform_indices = @transform_4, window_bounds = array<i64: 1, 128>}, {transform_indices = @transform_5, window_bounds = array<i64: 16, 128>}]} {
    %c0 = arith.constant 0 : index
    %c0_0 = arith.constant 0 : index
    %0 = vector.load %arg1[%c0, %c0_0] : memref<16x1024xbf16, #tpu.memory_space<vmem>>, vector<16x1024xbf16>
    %c0_1 = arith.constant 0 : index
    %c0_2 = arith.constant 0 : index
    %1 = vector.load %arg2[%c0_1, %c0_2] : memref<1024x32xbf16, #tpu.memory_space<vmem>>, vector<1024x32xbf16>
    %cst = arith.constant dense<0.000000e+00> : vector<16x32xf32>
    %2 = tpu.matmul %0, %1, %cst {dimension_numbers = #tpu.dot_dimension_numbers<[1], [0], [0], [1], [0, 0, 1, 1], [], []>} : vector<16x1024xbf16>, vector<1024x32xbf16>, vector<16x32xf32> -> vector<16x32xf32>
    %c0_3 = arith.constant 0 : index
    %c0_4 = arith.constant 0 : index
    %3 = vector.load %arg3[%c0_3, %c0_4] : memref<1x32xf32, #tpu.memory_space<vmem>>, vector<1x32xf32>
    %4 = vector.broadcast %3 : vector<1x32xf32> to vector<16x32xf32>
    %5 = arith.addf %2, %4 : vector<16x32xf32>
    %cst_5 = arith.constant 0.000000e+00 : f32
    %6 = vector.broadcast %cst_5 : f32 to vector<16x32xf32>
    %7 = arith.maximumf %5, %6 : vector<16x32xf32>
    %8 = arith.truncf %7 : vector<16x32xf32> to vector<16x32xbf16>
    %c0_6 = arith.constant 0 : index
    %c0_7 = arith.constant 0 : index
    %9 = vector.load %arg4[%c0_6, %c0_7] : memref<32x128xbf16, #tpu.memory_space<vmem>>, vector<32x128xbf16>
    %cst_8 = arith.constant dense<0.000000e+00> : vector<16x128xf32>
    %10 = tpu.matmul %8, %9, %cst_8 {dimension_numbers = #tpu.dot_dimension_numbers<[1], [0], [0], [1], [0, 0, 1, 1], [], []>} : vector<16x32xbf16>, vector<32x128xbf16>, vector<16x128xf32> -> vector<16x128xf32>
    %c0_9 = arith.constant 0 : index
    %c0_10 = arith.constant 0 : index
    %11 = vector.load %arg5[%c0_9, %c0_10] : memref<1x128xf32, #tpu.memory_space<vmem>>, vector<1x128xf32>
    %12 = vector.broadcast %11 : vector<1x128xf32> to vector<16x128xf32>
    %13 = arith.addf %10, %12 : vector<16x128xf32>
    %c0_11 = arith.constant 0 : index
    %c0_12 = arith.constant 0 : index
    %14 = vector.load %arg6[%c0_11, %c0_12] : memref<16x128xf32, #tpu.memory_space<vmem>>, vector<16x128xf32>
    tpu.vector_store %arg6[%c0_11, %c0_12], %13 {strides = array<i32>} : memref<16x128xf32, #tpu.memory_space<vmem>>, vector<16x128xf32>,
    return
  }
  func.func @transform_0(%arg0: i32) -> (i32, i32) {
    %c0_i32 = arith.constant 0 : i32
    %c0_i32_0 = arith.constant 0 : i32
    return %arg0, %c0_i32 : i32, i32
  }
  func.func @transform_1(%arg0: i32) -> (i32, i32) {
    %c0_i32 = arith.constant 0 : i32
    %c0_i32_0 = arith.constant 0 : i32
    %c0_i32_1 = arith.constant 0 : i32
    return %c0_i32, %c0_i32_0 : i32, i32
  }
  func.func @transform_2(%arg0: i32) -> (i32, i32) {
    %c0_i32 = arith.constant 0 : i32
    %c0_i32_0 = arith.constant 0 : i32
    %c0_i32_1 = arith.constant 0 : i32
    return %c0_i32, %c0_i32_0 : i32, i32
  }
  func.func @transform_3(%arg0: i32) -> (i32, i32) {
    %c0_i32 = arith.constant 0 : i32
    %c0_i32_0 = arith.constant 0 : i32
    %c0_i32_1 = arith.constant 0 : i32
    return %c0_i32, %c0_i32_0 : i32, i32
  }
  func.func @transform_4(%arg0: i32) -> (i32, i32) {
    %c0_i32 = arith.constant 0 : i32
    %c0_i32_0 = arith.constant 0 : i32
    %c0_i32_1 = arith.constant 0 : i32
    return %c0_i32, %c0_i32_0 : i32, i32
  }
  func.func @transform_5(%arg0: i32) -> (i32, i32) {
    %c0_i32 = arith.constant 0 : i32
    %c0_i32_0 = arith.constant 0 : i32
    return %arg0, %c0_i32 : i32, i32
  }
}

</mosaic_0001>

<llo_original>
// kernel: tpu_custom_call.1
$region0: #{tpu_custom_call.1}
  #allocation0 [shape = 'u32[]', space=smem, size = 0x4, offset = 0x4, fixed_abs, tag = 'smem constant byte address 0x4 - core index']
  #allocation1 [shape = 'u32[72,128]{1,0:T(1,128)}', space=vmem, size = 0x9000, scoped, tag = 'internal scratch']
  %s0 = inlined_call_operand.vmem [shape: bf16[16,1024], index: 0, kind: input, shape index: {}]
  %s1 = inlined_call_operand.vmem [shape: bf16[1024,32], index: 1, kind: input, shape index: {}]
  %s2 = inlined_call_operand.vmem [shape: f32[1,32], index: 2, kind: input, shape index: {}]
  %s3 = inlined_call_operand.vmem [shape: bf16[32,128], index: 3, kind: input, shape index: {}]
  %s4 = inlined_call_operand.vmem [shape: f32[1,128], index: 4, kind: input, shape index: {}]
  %s5 = inlined_call_operand.hbm [shape: f32[16,128], index: 5, kind: output, shape index: {}]
  %s6 = sld [smem:[#allocation0]]
  $region30: #{tpu_custom_call.1} parent=0
    _
  %s8 = ssub.s32 1, %s6
  %s9 = scalar_select 0, %s8, %s6
  $region1: #{tpu_custom_call.1} parent=0
    #allocation2 [shape = 'u8[8192]{0}', space=vmem, size = 0x2000, scoped, tag = 'output window, operand 0, single buffered']
    #allocation3 [shape = 's32[1]{0}', space=sflag, size = 0x4, scoped, tag = 'scoped memory for tpu_custom_call.1']
    %10 = vsyncpa [#allocation3], 0
    // Predicated region
    $region2: #{tpu_custom_call.1} parent=1 // pred_check
      _
    $region3: #{tpu_custom_call.1} parent=1 // pred_check_branch
      %12 = sbr.rel (0) target = $region5
    $region4: #{tpu_custom_call.1} parent=1 // pred_region
      _
    $region5: #{tpu_custom_call.1} parent=1 // pred_fallthru
      _
    // Predicated region
    $region6: #{tpu_custom_call.1} parent=1 // pred_check
      _
    $region7: #{tpu_custom_call.1} parent=1 // pred_check_branch
      %14 = sbr.rel (0) target = $region9
    $region8: #{tpu_custom_call.1} parent=1 // pred_region
      _
    $region9: #{tpu_custom_call.1} parent=1 // pred_fallthru
      _
    // Predicated region
    $region10: #{tpu_custom_call.1} parent=1 // pred_check
      _
    $region11: #{tpu_custom_call.1} parent=1 // pred_check_branch
      %16 = sbr.rel (0) target = $region13
    $region12: #{tpu_custom_call.1} parent=1 // pred_region
      _
    $region13: #{tpu_custom_call.1} parent=1 // pred_fallthru
      _
    // Predicated region
    $region14: #{tpu_custom_call.1} parent=1 // pred_check
      _
    $region15: #{tpu_custom_call.1} parent=1 // pred_check_branch
      %18 = sbr.rel (0) target = $region17
    $region16: #{tpu_custom_call.1} parent=1 // pred_region
      _
    $region17: #{tpu_custom_call.1} parent=1 // pred_fallthru
      _
    // Predicated region
    $region18: #{tpu_custom_call.1} parent=1 // pred_check
      _
    $region19: #{tpu_custom_call.1} parent=1 // pred_check_branch
      %20 = sbr.rel (0) target = $region21
    $region20: #{tpu_custom_call.1} parent=1 // pred_region
      _
    $region21: #{tpu_custom_call.1} parent=1 // pred_fallthru
      _
    %v22 = vld [vmem:[%s0] sm:$0xff]
    %v23 = vld [vmem:[%s0 + $0x8] sm:$0xff]
    %v24 = vld [vmem:[%s0 + $0x10] sm:$0xff]
    %v25 = vld [vmem:[%s0 + $0x18] sm:$0xff]
    %v26 = vld [vmem:[%s0 + $0x20] sm:$0xff]
    %v27 = vld [vmem:[%s0 + $0x28] sm:$0xff]
    %v28 = vld [vmem:[%s0 + $0x30] sm:$0xff]
    %v29 = vld [vmem:[%s0 + $0x38] sm:$0xff]
    %v30 = vld [vmem:[%s1] sm:$0xf]
    %v31 = vld [vmem:[%s1 + $0x4] sm:$0xf]
    %v32 = vld [vmem:[%s1 + $0x8] sm:$0xf]
    %v33 = vld [vmem:[%s1 + $0xc] sm:$0xf]
    %v34 = vld [vmem:[%s1 + $0x10] sm:$0xf]
    %v35 = vld [vmem:[%s1 + $0x14] sm:$0xf]
    %v36 = vld [vmem:[%s1 + $0x18] sm:$0xf]
    %v37 = vld [vmem:[%s1 + $0x1c] sm:$0xf]
    %v38 = vld [vmem:[%s1 + $0x20] sm:$0xf]
    %v39 = vld [vmem:[%s1 + $0x24] sm:$0xf]
    %v40 = vld [vmem:[%s1 + $0x28] sm:$0xf]
    %v41 = vld [vmem:[%s1 + $0x2c] sm:$0xf]
    %v42 = vld [vmem:[%s1 + $0x30] sm:$0xf]
    %v43 = vld [vmem:[%s1 + $0x34] sm:$0xf]
    %v44 = vld [vmem:[%s1 + $0x38] sm:$0xf]
    %v45 = vld [vmem:[%s1 + $0x3c] sm:$0xf]
    %v46 = vld [vmem:[%s1 + $0x40] sm:$0xf]
    %v47 = vld [vmem:[%s1 + $0x44] sm:$0xf]
    %v48 = vld [vmem:[%s1 + $0x48] sm:$0xf]
    %v49 = vld [vmem:[%s1 + $0x4c] sm:$0xf]
    %v50 = vld [vmem:[%s1 + $0x50] sm:$0xf]
    %v51 = vld [vmem:[%s1 + $0x54] sm:$0xf]
    %v52 = vld [vmem:[%s1 + $0x58] sm:$0xf]
    %v53 = vld [vmem:[%s1 + $0x5c] sm:$0xf]
    %v54 = vld [vmem:[%s1 + $0x60] sm:$0xf]
    %v55 = vld [vmem:[%s1 + $0x64] sm:$0xf]
    %v56 = vld [vmem:[%s1 + $0x68] sm:$0xf]
    %v57 = vld [vmem:[%s1 + $0x6c] sm:$0xf]
    %v58 = vld [vmem:[%s1 + $0x70] sm:$0xf]
    %v59 = vld [vmem:[%s1 + $0x74] sm:$0xf]
    %v60 = vld [vmem:[%s1 + $0x78] sm:$0xf]
    %v61 = vld [vmem:[%s1 + $0x7c] sm:$0xf]
    %v62 = vld [vmem:[%s1 + $0x80] sm:$0xf]
    %v63 = vld [vmem:[%s1 + $0x84] sm:$0xf]
    %v64 = vld [vmem:[%s1 + $0x88] sm:$0xf]
    %v65 = vld [vmem:[%s1 + $0x8c] sm:$0xf]
    %v66 = vld [vmem:[%s1 + $0x90] sm:$0xf]
    %v67 = vld [vmem:[%s1 + $0x94] sm:$0xf]
    %v68 = vld [vmem:[%s1 + $0x98] sm:$0xf]
    %v69 = vld [vmem:[%s1 + $0x9c] sm:$0xf]
    %v70 = vld [vmem:[%s1 + $0xa0] sm:$0xf]
    %v71 = vld [vmem:[%s1 + $0xa4] sm:$0xf]
    %v72 = vld [vmem:[%s1 + $0xa8] sm:$0xf]
    %v73 = vld [vmem:[%s1 + $0xac] sm:$0xf]
    %v74 = vld [vmem:[%s1 + $0xb0] sm:$0xf]
    %v75 = vld [vmem:[%s1 + $0xb4] sm:$0xf]
    %v76 = vld [vmem:[%s1 + $0xb8] sm:$0xf]
    %v77 = vld [vmem:[%s1 + $0xbc] sm:$0xf]
    %v78 = vld [vmem:[%s1 + $0xc0] sm:$0xf]
    %v79 = vld [vmem:[%s1 + $0xc4] sm:$0xf]
    %v80 = vld [vmem:[%s1 + $0xc8] sm:$0xf]
    %v81 = vld [vmem:[%s1 + $0xcc] sm:$0xf]
    %v82 = vld [vmem:[%s1 + $0xd0] sm:$0xf]
    %v83 = vld [vmem:[%s1 + $0xd4] sm:$0xf]
    %v84 = vld [vmem:[%s1 + $0xd8] sm:$0xf]
    %v85 = vld [vmem:[%s1 + $0xdc] sm:$0xf]
    %v86 = vld [vmem:[%s1 + $0xe0] sm:$0xf]
    %v87 = vld [vmem:[%s1 + $0xe4] sm:$0xf]
    %v88 = vld [vmem:[%s1 + $0xe8] sm:$0xf]
    %v89 = vld [vmem:[%s1 + $0xec] sm:$0xf]
    %v90 = vld [vmem:[%s1 + $0xf0] sm:$0xf]
    %v91 = vld [vmem:[%s1 + $0xf4] sm:$0xf]
    %v92 = vld [vmem:[%s1 + $0xf8] sm:$0xf]
    %v93 = vld [vmem:[%s1 + $0xfc] sm:$0xf]
    %v94 = vld [vmem:[%s1 + $0x100] sm:$0xf]
    %v95 = vld [vmem:[%s1 + $0x104] sm:$0xf]
    %v96 = vld [vmem:[%s1 + $0x108] sm:$0xf]
    %v97 = vld [vmem:[%s1 + $0x10c] sm:$0xf]
    %v98 = vld [vmem:[%s1 + $0x110] sm:$0xf]
    %v99 = vld [vmem:[%s1 + $0x114] sm:$0xf]
    %v100 = vld [vmem:[%s1 + $0x118] sm:$0xf]
    %v101 = vld [vmem:[%s1 + $0x11c] sm:$0xf]
    %v102 = vld [vmem:[%s1 + $0x120] sm:$0xf]
    %v103 = vld [vmem:[%s1 + $0x124] sm:$0xf]
    %v104 = vld [vmem:[%s1 + $0x128] sm:$0xf]
    %v105 = vld [vmem:[%s1 + $0x12c] sm:$0xf]
    %v106 = vld [vmem:[%s1 + $0x130] sm:$0xf]
    %v107 = vld [vmem:[%s1 + $0x134] sm:$0xf]
    %v108 = vld [vmem:[%s1 + $0x138] sm:$0xf]
    %v109 = vld [vmem:[%s1 + $0x13c] sm:$0xf]
    %v110 = vld [vmem:[%s1 + $0x140] sm:$0xf]
    %v111 = vld [vmem:[%s1 + $0x144] sm:$0xf]
    %v112 = vld [vmem:[%s1 + $0x148] sm:$0xf]
    %v113 = vld [vmem:[%s1 + $0x14c] sm:$0xf]
    %v114 = vld [vmem:[%s1 + $0x150] sm:$0xf]
    %v115 = vld [vmem:[%s1 + $0x154] sm:$0xf]
    %v116 = vld [vmem:[%s1 + $0x158] sm:$0xf]
    %v117 = vld [vmem:[%s1 + $0x15c] sm:$0xf]
    %v118 = vld [vmem:[%s1 + $0x160] sm:$0xf]
    %v119 = vld [vmem:[%s1 + $0x164] sm:$0xf]
    %v120 = vld [vmem:[%s1 + $0x168] sm:$0xf]
    %v121 = vld [vmem:[%s1 + $0x16c] sm:$0xf]
    %v122 = vld [vmem:[%s1 + $0x170] sm:$0xf]
    %v123 = vld [vmem:[%s1 + $0x174] sm:$0xf]
    %v124 = vld [vmem:[%s1 + $0x178] sm:$0xf]
    %v125 = vld [vmem:[%s1 + $0x17c] sm:$0xf]
    %v126 = vld [vmem:[%s1 + $0x180] sm:$0xf]
    %v127 = vld [vmem:[%s1 + $0x184] sm:$0xf]
    %v128 = vld [vmem:[%s1 + $0x188] sm:$0xf]
    %v129 = vld [vmem:[%s1 + $0x18c] sm:$0xf]
    %v130 = vld [vmem:[%s1 + $0x190] sm:$0xf]
    %v131 = vld [vmem:[%s1 + $0x194] sm:$0xf]
    %v132 = vld [vmem:[%s1 + $0x198] sm:$0xf]
    %v133 = vld [vmem:[%s1 + $0x19c] sm:$0xf]
    %v134 = vld [vmem:[%s1 + $0x1a0] sm:$0xf]
    %v135 = vld [vmem:[%s1 + $0x1a4] sm:$0xf]
    %v136 = vld [vmem:[%s1 + $0x1a8] sm:$0xf]
    %v137 = vld [vmem:[%s1 + $0x1ac] sm:$0xf]
    %v138 = vld [vmem:[%s1 + $0x1b0] sm:$0xf]
    %v139 = vld [vmem:[%s1 + $0x1b4] sm:$0xf]
    %v140 = vld [vmem:[%s1 + $0x1b8] sm:$0xf]
    %v141 = vld [vmem:[%s1 + $0x1bc] sm:$0xf]
    %v142 = vld [vmem:[%s1 + $0x1c0] sm:$0xf]
    %v143 = vld [vmem:[%s1 + $0x1c4] sm:$0xf]
    %v144 = vld [vmem:[%s1 + $0x1c8] sm:$0xf]
    %v145 = vld [vmem:[%s1 + $0x1cc] sm:$0xf]
    %v146 = vld [vmem:[%s1 + $0x1d0] sm:$0xf]
    %v147 = vld [vmem:[%s1 + $0x1d4] sm:$0xf]
    %v148 = vld [vmem:[%s1 + $0x1d8] sm:$0xf]
    %v149 = vld [vmem:[%s1 + $0x1dc] sm:$0xf]
    %v150 = vld [vmem:[%s1 + $0x1e0] sm:$0xf]
    %v151 = vld [vmem:[%s1 + $0x1e4] sm:$0xf]
    %v152 = vld [vmem:[%s1 + $0x1e8] sm:$0xf]
    %v153 = vld [vmem:[%s1 + $0x1ec] sm:$0xf]
    %v154 = vld [vmem:[%s1 + $0x1f0] sm:$0xf]
    %v155 = vld [vmem:[%s1 + $0x1f4] sm:$0xf]
    %v156 = vld [vmem:[%s1 + $0x1f8] sm:$0xf]
    %v157 = vld [vmem:[%s1 + $0x1fc] sm:$0xf]
    %v158 = vld [vmem:[%s2] sm:$0x1]
    %v160 = vperm.slane %v158, 0
    %v170 = vunpack.c.l.b16 %v22
    %v171 = vunpack.c.h.b16 %v22
    %v172 = vunpack.c.l.b16 %v23
    %v173 = vunpack.c.h.b16 %v23
    %v174 = vunpack.c.l.b16 %v24
    %v175 = vunpack.c.h.b16 %v24
    %v176 = vunpack.c.l.b16 %v25
    %v177 = vunpack.c.h.b16 %v25
    %v178 = vunpack.c.l.b16 %v26
    %v179 = vunpack.c.h.b16 %v26
    %v180 = vunpack.c.l.b16 %v27
    %v181 = vunpack.c.h.b16 %v27
    %v182 = vunpack.c.l.b16 %v28
    %v183 = vunpack.c.h.b16 %v28
    %v184 = vunpack.c.l.b16 %v29
    %v185 = vunpack.c.h.b16 %v29
    %v186 = vpack.c.b16 %v178, %v170
    %v187 = vpack.c.b16 %v179, %v171
    %v188 = vpack.c.b16 %v180, %v172
    %v189 = vpack.c.b16 %v181, %v173
    %v190 = vpack.c.b16 %v182, %v174
    %v191 = vpack.c.b16 %v183, %v175
    %v192 = vpack.c.b16 %v184, %v176
    %v193 = vpack.c.b16 %v185, %v177
    %v330 = vunpack.c.l.b16 %v30
    %v331 = vunpack.c.l.b16 %v31
    %v332 = vunpack.c.l.b16 %v32
    %v333 = vunpack.c.l.b16 %v33
    %v334 = vunpack.c.l.b16 %v34
    %v335 = vunpack.c.l.b16 %v35
    %v336 = vunpack.c.l.b16 %v36
    %v337 = vunpack.c.l.b16 %v37
    %v338 = vunpack.c.l.b16 %v38
    %v339 = vunpack.c.l.b16 %v39
    %v340 = vunpack.c.l.b16 %v40
    %v341 = vunpack.c.l.b16 %v41
    %v342 = vunpack.c.l.b16 %v42
    %v343 = vunpack.c.l.b16 %v43
    %v344 = vunpack.c.l.b16 %v44
    %v345 = vunpack.c.l.b16 %v45
    %v346 = vunpack.c.l.b16 %v46
    %v347 = vunpack.c.l.b16 %v47
    %v348 = vunpack.c.l.b16 %v48
    %v349 = vunpack.c.l.b16 %v49
    %v350 = vunpack.c.l.b16 %v50
    %v351 = vunpack.c.l.b16 %v51
    %v352 = vunpack.c.l.b16 %v52
    %v353 = vunpack.c.l.b16 %v53
    %v354 = vunpack.c.l.b16 %v54
    %v355 = vunpack.c.l.b16 %v55
    %v356 = vunpack.c.l.b16 %v56
    %v357 = vunpack.c.l.b16 %v57
    %v358 = vunpack.c.l.b16 %v58
    %v359 = vunpack.c.l.b16 %v59
    %v360 = vunpack.c.l.b16 %v60
    %v361 = vunpack.c.l.b16 %v61
    %v362 = vunpack.c.l.b16 %v62
    %v363 = vunpack.c.l.b16 %v63
    %v364 = vunpack.c.l.b16 %v64
    %v365 = vunpack.c.l.b16 %v65
    %v366 = vunpack.c.l.b16 %v66
    %v367 = vunpack.c.l.b16 %v67
    %v368 = vunpack.c.l.b16 %v68
    %v369 = vunpack.c.l.b16 %v69
    %v370 = vunpack.c.l.b16 %v70
    %v371 = vunpack.c.l.b16 %v71
    %v372 = vunpack.c.l.b16 %v72
    %v373 = vunpack.c.l.b16 %v73
    %v374 = vunpack.c.l.b16 %v74
    %v375 = vunpack.c.l.b16 %v75
    %v376 = vunpack.c.l.b16 %v76
    %v377 = vunpack.c.l.b16 %v77
    %v378 = vunpack.c.l.b16 %v78
    %v379 = vunpack.c.l.b16 %v79
    %v380 = vunpack.c.l.b16 %v80
    %v381 = vunpack.c.l.b16 %v81
    %v382 = vunpack.c.l.b16 %v82
    %v383 = vunpack.c.l.b16 %v83
    %v384 = vunpack.c.l.b16 %v84
    %v385 = vunpack.c.l.b16 %v85
    %v386 = vunpack.c.l.b16 %v86
    %v387 = vunpack.c.l.b16 %v87
    %v388 = vunpack.c.l.b16 %v88
    %v389 = vunpack.c.l.b16 %v89
    %v390 = vunpack.c.l.b16 %v90
    %v391 = vunpack.c.l.b16 %v91
    %v392 = vunpack.c.l.b16 %v92
    %v393 = vunpack.c.l.b16 %v93
    %v394 = vunpack.c.l.b16 %v94
    %v395 = vunpack.c.l.b16 %v95
    %v396 = vunpack.c.l.b16 %v96
    %v397 = vunpack.c.l.b16 %v97
    %v398 = vunpack.c.l.b16 %v98
    %v399 = vunpack.c.l.b16 %v99
    %v400 = vunpack.c.l.b16 %v100
    %v401 = vunpack.c.l.b16 %v101
    %v402 = vunpack.c.l.b16 %v102
    %v403 = vunpack.c.l.b16 %v103
    %v404 = vunpack.c.l.b16 %v104
    %v405 = vunpack.c.l.b16 %v105
    %v406 = vunpack.c.l.b16 %v106
    %v407 = vunpack.c.l.b16 %v107
    %v408 = vunpack.c.l.b16 %v108
    %v409 = vunpack.c.l.b16 %v109
    %v410 = vunpack.c.l.b16 %v110
    %v411 = vunpack.c.l.b16 %v111
    %v412 = vunpack.c.l.b16 %v112
    %v413 = vunpack.c.l.b16 %v113
    %v414 = vunpack.c.l.b16 %v114
    %v415 = vunpack.c.l.b16 %v115
    %v416 = vunpack.c.l.b16 %v116
    %v417 = vunpack.c.l.b16 %v117
    %v418 = vunpack.c.l.b16 %v118
    %v419 = vunpack.c.l.b16 %v119
    %v420 = vunpack.c.l.b16 %v120
    %v421 = vunpack.c.l.b16 %v121
    %v422 = vunpack.c.l.b16 %v122
    %v423 = vunpack.c.l.b16 %v123
    %v424 = vunpack.c.l.b16 %v124
    %v425 = vunpack.c.l.b16 %v125
    %v426 = vunpack.c.l.b16 %v126
    %v427 = vunpack.c.l.b16 %v127
    %v428 = vunpack.c.l.b16 %v128
    %v429 = vunpack.c.l.b16 %v129
    %v430 = vunpack.c.l.b16 %v130
    %v431 = vunpack.c.l.b16 %v131
    %v432 = vunpack.c.l.b16 %v132
    %v433 = vunpack.c.l.b16 %v133
    %v434 = vunpack.c.l.b16 %v134
    %v435 = vunpack.c.l.b16 %v135
    %v436 = vunpack.c.l.b16 %v136
    %v437 = vunpack.c.l.b16 %v137
    %v438 = vunpack.c.l.b16 %v138
    %v439 = vunpack.c.l.b16 %v139
    %v440 = vunpack.c.l.b16 %v140
    %v441 = vunpack.c.l.b16 %v141
    %v442 = vunpack.c.l.b16 %v142
    %v443 = vunpack.c.l.b16 %v143
    %v444 = vunpack.c.l.b16 %v144
    %v445 = vunpack.c.l.b16 %v145
    %v446 = vunpack.c.l.b16 %v146
    %v447 = vunpack.c.l.b16 %v147
    %v448 = vunpack.c.l.b16 %v148
    %v449 = vunpack.c.l.b16 %v149
    %v450 = vunpack.c.l.b16 %v150
    %v451 = vunpack.c.l.b16 %v151
    %v452 = vunpack.c.l.b16 %v152
    %v453 = vunpack.c.l.b16 %v153
    %v454 = vunpack.c.l.b16 %v154
    %v455 = vunpack.c.l.b16 %v155
    %v456 = vunpack.c.l.b16 %v156
    %v457 = vunpack.c.l.b16 %v157
    %v458 = vpack.c.b16 %v331, %v330
    %v459 = vpack.c.b16 %v333, %v332
    %v460 = vpack.c.b16 %v335, %v334
    %v461 = vpack.c.b16 %v337, %v336
    %v462 = vpack.c.b16 %v339, %v338
    %v463 = vpack.c.b16 %v341, %v340
    %v464 = vpack.c.b16 %v343, %v342
    %v465 = vpack.c.b16 %v345, %v344
    %v466 = vpack.c.b16 %v347, %v346
    %v467 = vpack.c.b16 %v349, %v348
    %v468 = vpack.c.b16 %v351, %v350
    %v469 = vpack.c.b16 %v353, %v352
    %v470 = vpack.c.b16 %v355, %v354
    %v471 = vpack.c.b16 %v357, %v356
    %v472 = vpack.c.b16 %v359, %v358
    %v473 = vpack.c.b16 %v361, %v360
    %v474 = vpack.c.b16 %v363, %v362
    %v475 = vpack.c.b16 %v365, %v364
    %v476 = vpack.c.b16 %v367, %v366
    %v477 = vpack.c.b16 %v369, %v368
    %v478 = vpack.c.b16 %v371, %v370
    %v479 = vpack.c.b16 %v373, %v372
    %v480 = vpack.c.b16 %v375, %v374
    %v481 = vpack.c.b16 %v377, %v376
    %v482 = vpack.c.b16 %v379, %v378
    %v483 = vpack.c.b16 %v381, %v380
    %v484 = vpack.c.b16 %v383, %v382
    %v485 = vpack.c.b16 %v385, %v384
    %v486 = vpack.c.b16 %v387, %v386
    %v487 = vpack.c.b16 %v389, %v388
    %v488 = vpack.c.b16 %v391, %v390
    %v489 = vpack.c.b16 %v393, %v392
    %v490 = vpack.c.b16 %v395, %v394
    %v491 = vpack.c.b16 %v397, %v396
    %v492 = vpack.c.b16 %v399, %v398
    %v493 = vpack.c.b16 %v401, %v400
    %v494 = vpack.c.b16 %v403, %v402
    %v495 = vpack.c.b16 %v405, %v404
    %v496 = vpack.c.b16 %v407, %v406
    %v497 = vpack.c.b16 %v409, %v408
    %v498 = vpack.c.b16 %v411, %v410
    %v499 = vpack.c.b16 %v413, %v412
    %v500 = vpack.c.b16 %v415, %v414
    %v501 = vpack.c.b16 %v417, %v416
    %v502 = vpack.c.b16 %v419, %v418
    %v503 = vpack.c.b16 %v421, %v420
    %v504 = vpack.c.b16 %v423, %v422
    %v505 = vpack.c.b16 %v425, %v424
    %v506 = vpack.c.b16 %v427, %v426
    %v507 = vpack.c.b16 %v429, %v428
    %v508 = vpack.c.b16 %v431, %v430
    %v509 = vpack.c.b16 %v433, %v432
    %v510 = vpack.c.b16 %v435, %v434
    %v511 = vpack.c.b16 %v437, %v436
    %v512 = vpack.c.b16 %v439, %v438
    %v513 = vpack.c.b16 %v441, %v440
    %v514 = vpack.c.b16 %v443, %v442
    %v515 = vpack.c.b16 %v445, %v444
    %v516 = vpack.c.b16 %v447, %v446
    %v517 = vpack.c.b16 %v449, %v448
    %v518 = vpack.c.b16 %v451, %v450
    %v519 = vpack.c.b16 %v453, %v452
    %v520 = vpack.c.b16 %v455, %v454
    %v521 = vpack.c.b16 %v457, %v456
    %586 = vmatpush.bf16.msra.mxu0 %v465
    %587 = vmatpush.bf16.msra.mxu0 %v464
    %588 = vmatpush.bf16.msra.mxu0 %v463
    %589 = vmatpush.bf16.msra.mxu0 %v462
    %590 = vmatpush.bf16.msra.mxu0 %v461
    %591 = vmatpush.bf16.msra.mxu0 %v460
    %592 = vmatpush.bf16.msra.mxu0 %v459
    %593 = vmatpush.bf16.msra.mxu0 %v458
    %594 = vmatmul.bf16.gmra.mxu0 %v186
    %v595 = vpop.f32.mrf.mxu0
    %v596 = vadd.f32 %v160, %v595
    %v597 = vpop.f32.mrf.mxu0
    %v598 = vadd.f32 %v160, %v597
    %599 = vdwg.mxu0
    %600 = vmatpush.bf16.msra.mxu0 %v473
    %601 = vmatpush.bf16.msra.mxu0 %v472
    %602 = vmatpush.bf16.msra.mxu0 %v471
    %603 = vmatpush.bf16.msra.mxu0 %v470
    %604 = vmatpush.bf16.msra.mxu0 %v469
    %605 = vmatpush.bf16.msra.mxu0 %v468
    %606 = vmatpush.bf16.msra.mxu0 %v467
    %607 = vmatpush.bf16.msra.mxu0 %v466
    %608 = vmatmul.bf16.gmra.mxu0 %v187
    %v609 = vpop.f32.mrf.mxu0
    %v610 = vadd.f32 %v596, %v609
    %v611 = vpop.f32.mrf.mxu0
    %v612 = vadd.f32 %v598, %v611
    %613 = vdwg.mxu0
    %614 = vmatpush.bf16.msra.mxu0 %v481
    %615 = vmatpush.bf16.msra.mxu0 %v480
    %616 = vmatpush.bf16.msra.mxu0 %v479
    %617 = vmatpush.bf16.msra.mxu0 %v478
    %618 = vmatpush.bf16.msra.mxu0 %v477
    %619 = vmatpush.bf16.msra.mxu0 %v476
    %620 = vmatpush.bf16.msra.mxu0 %v475
    %621 = vmatpush.bf16.msra.mxu0 %v474
    %622 = vmatmul.bf16.gmra.mxu0 %v188
    %v623 = vpop.f32.mrf.mxu0
    %v624 = vadd.f32 %v610, %v623
    %v625 = vpop.f32.mrf.mxu0
    %v626 = vadd.f32 %v612, %v625
    %627 = vdwg.mxu0
    %628 = vmatpush.bf16.msra.mxu0 %v489
    %629 = vmatpush.bf16.msra.mxu0 %v488
    %630 = vmatpush.bf16.msra.mxu0 %v487
    %631 = vmatpush.bf16.msra.mxu0 %v486
    %632 = vmatpush.bf16.msra.mxu0 %v485
    %633 = vmatpush.bf16.msra.mxu0 %v484
    %634 = vmatpush.bf16.msra.mxu0 %v483
    %635 = vmatpush.bf16.msra.mxu0 %v482
    %636 = vmatmul.bf16.gmra.mxu0 %v189
    %v637 = vpop.f32.mrf.mxu0
    %v638 = vadd.f32 %v624, %v637
    %v639 = vpop.f32.mrf.mxu0
    %v640 = vadd.f32 %v626, %v639
    %641 = vdwg.mxu0
    %642 = vmatpush.bf16.msra.mxu0 %v497
    %643 = vmatpush.bf16.msra.mxu0 %v496
    %644 = vmatpush.bf16.msra.mxu0 %v495
    %645 = vmatpush.bf16.msra.mxu0 %v494
    %646 = vmatpush.bf16.msra.mxu0 %v493
    %647 = vmatpush.bf16.msra.mxu0 %v492
    %648 = vmatpush.bf16.msra.mxu0 %v491
    %649 = vmatpush.bf16.msra.mxu0 %v490
    %650 = vmatmul.bf16.gmra.mxu0 %v190
    %v651 = vpop.f32.mrf.mxu0
    %v652 = vadd.f32 %v638, %v651
    %v653 = vpop.f32.mrf.mxu0
    %v654 = vadd.f32 %v640, %v653
    %655 = vdwg.mxu0
    %656 = vmatpush.bf16.msra.mxu0 %v505
    %657 = vmatpush.bf16.msra.mxu0 %v504
    %658 = vmatpush.bf16.msra.mxu0 %v503
    %659 = vmatpush.bf16.msra.mxu0 %v502
    %660 = vmatpush.bf16.msra.mxu0 %v501
    %661 = vmatpush.bf16.msra.mxu0 %v500
    %662 = vmatpush.bf16.msra.mxu0 %v499
    %663 = vmatpush.bf16.msra.mxu0 %v498
    %664 = vmatmul.bf16.gmra.mxu0 %v191
    %v665 = vpop.f32.mrf.mxu0
    %v666 = vadd.f32 %v652, %v665
    %v667 = vpop.f32.mrf.mxu0
    %v668 = vadd.f32 %v654, %v667
    %669 = vdwg.mxu0
    %670 = vmatpush.bf16.msra.mxu0 %v513
    %671 = vmatpush.bf16.msra.mxu0 %v512
    %672 = vmatpush.bf16.msra.mxu0 %v511
    %673 = vmatpush.bf16.msra.mxu0 %v510
    %674 = vmatpush.bf16.msra.mxu0 %v509
    %675 = vmatpush.bf16.msra.mxu0 %v508
    %676 = vmatpush.bf16.msra.mxu0 %v507
    %677 = vmatpush.bf16.msra.mxu0 %v506
    %678 = vmatmul.bf16.gmra.mxu0 %v192
    %v679 = vpop.f32.mrf.mxu0
    %v680 = vadd.f32 %v666, %v679
    %v681 = vpop.f32.mrf.mxu0
    %v682 = vadd.f32 %v668, %v681
    %683 = vdwg.mxu0
    %684 = vmatpush.bf16.msra.mxu0 %v521
    %685 = vmatpush.bf16.msra.mxu0 %v520
    %686 = vmatpush.bf16.msra.mxu0 %v519
    %687 = vmatpush.bf16.msra.mxu0 %v518
    %688 = vmatpush.bf16.msra.mxu0 %v517
    %689 = vmatpush.bf16.msra.mxu0 %v516
    %690 = vmatpush.bf16.msra.mxu0 %v515
    %691 = vmatpush.bf16.msra.mxu0 %v514
    %692 = vmatmul.bf16.gmra.mxu0 %v193
    %v693 = vpop.f32.mrf.mxu0
    %v694 = vadd.f32 %v680, %v693
    %v695 = vpop.f32.mrf.mxu0
    %v696 = vadd.f32 %v682, %v695
    %697 = vdwg.mxu0
    %v698 = vmax.f32 %v694, 0.0
    %v699 = vmax.f32 %v696, 0.0
    %v700 = vpack.c.bf16 %v699, %v698
    %v701 = vld [vmem:[%s3] sm:$0xf]
    %v702 = vld [vmem:[%s3 + $0x4] sm:$0xf]
    %v703 = vld [vmem:[%s3 + $0x8] sm:$0xf]
    %v704 = vld [vmem:[%s3 + $0xc] sm:$0xf]
    %v705 = vld [vmem:[%s4] sm:$0x1]
    %v707 = vperm.slane %v705, 0
    %v713 = vunpack.c.l.b16 %v701
    %v714 = vunpack.c.l.b16 %v702
    %v715 = vunpack.c.l.b16 %v703
    %v716 = vunpack.c.l.b16 %v704
    %v717 = vpack.c.b16 %v714, %v713
    %v718 = vpack.c.b16 %v716, %v715
    %vm721 = vcmask 261120
    %v723 = vsel %vm721, %v700, 0
    %725 = vmatpush.bf16.msra.mxu0 0
    %726 = vmatpush.bf16.msra.mxu0 0
    %727 = vmatpush.bf16.msra.mxu0 0
    %728 = vmatpush.bf16.msra.mxu0 0
    %729 = vmatpush.bf16.msra.mxu0 0
    %730 = vmatpush.bf16.msra.mxu0 0
    %731 = vmatpush.bf16.msra.mxu0 %v718
    %732 = vmatpush.bf16.msra.mxu0 %v717
    %733 = vmatmul.bf16.gmra.mxu0 %v723
    %v734 = vpop.f32.mrf.mxu0
    %v735 = vadd.f32 %v707, %v734
    %v736 = vpop.f32.mrf.mxu0
    %v737 = vadd.f32 %v707, %v736
    %738 = vdwg.mxu0
    %739 = vst [vmem:[#allocation2] sm:$0xff] %v735
    %740 = vst [vmem:[#allocation2 + $0x8] sm:$0xff] %v737
    // Predicated region
    $region22: #{tpu_custom_call.1} parent=1 // pred_check
      _
    $region23: #{tpu_custom_call.1} parent=1 // pred_check_branch
      %742 = sbr.rel (0) target = $region25
    $region24: #{tpu_custom_call.1} parent=1 // pred_region
      %744 = vsyncadd [#allocation3], 0
      %s745 = sshll.u32 [#allocation2], 4
      %s746 = int_to_ptr.vmem [resolvable:$true] %s745
      %s747 = sshll.u32 %s5, 4
      %s748 = int_to_ptr.hbm [resolvable:$true] %s747
      %753 = dma.vmem_to_hbm [thread:$0]  %s746, 256, %s748, [#allocation3], 128, 128, 8
    $region25: #{tpu_custom_call.1} parent=1 // pred_fallthru
      _
    // Predicated region
    $region26: #{tpu_custom_call.1} parent=1 // pred_check
      _
    $region27: #{tpu_custom_call.1} parent=1 // pred_check_branch
      %755 = sbr.rel (0) target = $region29
    $region28: #{tpu_custom_call.1} parent=1 // pred_region
      %757 = dma.done [#allocation3], 256
    $region29: #{tpu_custom_call.1} parent=1 // pred_fallthru
      _
    %758 = vsyncpa [#allocation3], 1

</llo_original>
